<compile_context>
chip_gen: v7x
topology: tpu7x:2x2x1
jax: 0.10.0
libtpu: 0.0.40
codegen_flags: <defaults>
</compile_context>

<pallas_src>
import jax
import jax.numpy as jnp
from jax.experimental import pallas as pl
from jax.experimental.pallas import tpu as pltpu

_LANES = 128
_TR_TARGET = 4096        # target rows (of 128 lanes) per input block  (~2 MiB f32)
_GRAN = 2048             # tile-length granularity in elements (16 sublanes x 128)


def _cdiv(a, b):
    return (a + b - 1) // b


def _cyclemask_kernel(fb_ref, ra_ref, m_ref, out_ref, acc_ref):
    t = pl.program_id(1)
    c = pl.program_id(2)

    # Reset the per-image accumulator at the start of each image's tiles.
    @pl.when((t == 0) & (c == 0))
    def _():
        acc_ref[...] = jnp.zeros_like(acc_ref)

    m = (1.0 - m_ref[...].astype(jnp.float32)) * 0.5
    fb = fb_ref[...].astype(jnp.float32)
    ra = ra_ref[...].astype(jnp.float32)
    # Keep the exact op order of the PyTorch code: a*m - b*m (not (a-b)*m).
    d = fb * m - ra * m
    sq = d * d
    # (TR, 128) -> (TR//8, 8, 128) matches the native vreg tiling (free reshape);
    # the axis-0 sum is pure VPU vreg adds into the (8, 128) vector accumulator.
    acc_ref[...] += jnp.sum(sq.reshape(-1, 8, _LANES), axis=0)

    # Emit this image's partial sums on its last tile.
    @pl.when((t == pl.num_programs(1) - 1) & (c == pl.num_programs(2) - 1))
    def _():
        out_ref[0] = acc_ref[...]


def cyclemaskloss(fake_B, real_A, mask):
    """fake_B, real_A: (N, 3, H, W); mask: (N, 1, H, W). Returns scalar f32."""
    N, C, H, W = fake_B.shape
    assert C == 3 and mask.shape == (N, 1, H, W)

    L = H * W
    n_elems = N * 3 * L

    # Tile-length selection: largest block <= ~(_TR_TARGET, 128), rounded to a
    # granularity that is layout-safe for f32/bf16, evenly dividing padded L.
    tl_target = _TR_TARGET * _LANES
    grid_t = max(1, _cdiv(L, tl_target))
    tl = _cdiv(_cdiv(L, grid_t), _GRAN) * _GRAN     # elements per (n, c, t) block
    Lp = grid_t * tl
    pad = Lp - L
    TR = tl // _LANES                               # rows of 128 per block

    fb = fake_B.reshape(N, 3, L)
    ra = real_A.reshape(N, 3, L)
    mk = mask.reshape(N, 1, L)
    if pad:
        # Zero pad fake/real -> padded elems contribute 0 regardless of mask.
        fb = jnp.pad(fb, ((0, 0), (0, 0), (0, pad)))
        ra = jnp.pad(ra, ((0, 0), (0, 0), (0, pad)))
        mk = jnp.pad(mk, ((0, 0), (0, 0), (0, pad)))

    # Free, contiguous reshapes to lane-dense 2D slabs.
    fb2 = fb.reshape(N * 3 * Lp // _LANES, _LANES)
    ra2 = ra.reshape(N * 3 * Lp // _LANES, _LANES)
    mk2 = mk.reshape(N * Lp // _LANES, _LANES)

    img_spec = pl.BlockSpec(
        (TR, _LANES), lambda n, t, c: ((n * 3 + c) * grid_t + t, 0))
    # Mask index_map ignores the (innermost) channel axis -> fetched once per
    # (n, t); Pallas skips the re-DMA when the block index repeats.
    mask_spec = pl.BlockSpec(
        (TR, _LANES), lambda n, t, c: (n * grid_t + t, 0))
    out_spec = pl.BlockSpec((1, 8, _LANES), lambda n, t, c: (n, 0, 0))

    partials = pl.pallas_call(
        _cyclemask_kernel,
        out_shape=jax.ShapeDtypeStruct((N, 8, _LANES), jnp.float32),
        grid_spec=pltpu.PrefetchScalarGridSpec(
            num_scalar_prefetch=0,
            grid=(N, grid_t, 3),
            in_specs=[img_spec, img_spec, mask_spec],
            out_specs=out_spec,
            scratch_shapes=[pltpu.VMEM((8, _LANES), jnp.float32)],
        ),
        compiler_params=pltpu.CompilerParams(
            # Batch axis "parallel": v7x splits images across its 2 TensorCores.
            dimension_semantics=("parallel", "arbitrary", "arbitrary"),
            vmem_limit_bytes=32 * 1024 * 1024,
        ),
    )(fb2, ra2, mk2)

    # Final cross-lane reduce of the tiny (N, 8, 128) partials + mean divide.
    return jnp.sum(partials) / jnp.float32(n_elems)


if __name__ == "__main__":
    key = jax.random.PRNGKey(0)
    k1, k2, k3 = jax.random.split(key, 3)

    N, H, W = 2, 16, 16
    fake_B = jax.random.normal(k1, (N, 3, H, W), dtype=jnp.float32)
    real_A = jax.random.normal(k2, (N, 3, H, W), dtype=jnp.float32)
    # mask in [-1, 1], single channel (as typical for this loss)
    mask = jax.random.uniform(k3, (N, 1, H, W), dtype=jnp.float32,
                              minval=-1.0, maxval=1.0)

    loss = cyclemaskloss(fake_B, real_A, mask)
    jax.block_until_ready(loss)

    # Reference check in plain JAX (same math).
    m = jnp.broadcast_to((1.0 - mask) / 2.0, (N, 3, H, W))
    ref = jnp.mean((fake_B * m - real_A * m) ** 2)
    assert jnp.allclose(loss, ref, rtol=1e-5, atol=1e-6), (loss, ref)

    print("KERNEL_OK")
</pallas_src>

<mosaic_0001>
module attributes {stable_mosaic.version = 11 : i64} {
  func.func @_cyclemask_kernel(%arg0: i32, %arg1: i32, %arg2: i32, %arg3: memref<16x128xf32, #tpu.memory_space<vmem>>, %arg4: memref<16x128xf32, #tpu.memory_space<vmem>>, %arg5: memref<16x128xf32, #tpu.memory_space<vmem>>, %arg6: memref<1x8x128xf32, #tpu.memory_space<vmem>>, %arg7: memref<8x128xf32, #tpu.memory_space<vmem>>) attributes {dimension_semantics = [#tpu.dimension_semantics<parallel>, #tpu.dimension_semantics<arbitrary>, #tpu.dimension_semantics<arbitrary>], iteration_bounds = array<i64: 2, 1, 3>, scalar_prefetch = 0 : i64, scratch_operands = 1 : i64, tpu.core_type = #tpu.core_type<tc>, window_params = [{transform_indices = @transform_0, window_bounds = array<i64: 16, 128>}, {transform_indices = @transform_1, window_bounds = array<i64: 16, 128>}, {transform_indices = @transform_2, window_bounds = array<i64: 16, 128>}, {transform_indices = @transform_3, window_bounds = array<i64: 1, 8, 128>}]} {
    %c0_i32 = arith.constant 0 : i32
    %0 = arith.cmpi eq, %arg1, %c0_i32 : i32
    %c0_i32_0 = arith.constant 0 : i32
    %1 = arith.cmpi eq, %arg2, %c0_i32_0 : i32
    %2 = arith.andi %0, %1 : i1
    %3 = arith.extui %2 : i1 to i32
    %c0_i32_1 = arith.constant 0 : i32
    %4 = arith.cmpi ne, %3, %c0_i32_1 : i32
    scf.if %4 {
      %cst_15 = arith.constant 0.000000e+00 : f32
      %26 = vector.broadcast %cst_15 : f32 to vector<8x128xf32>
      %c0_16 = arith.constant 0 : index
      %c0_17 = arith.constant 0 : index
      %27 = vector.load %arg7[%c0_16, %c0_17] : memref<8x128xf32, #tpu.memory_space<vmem>>, vector<8x128xf32>
      tpu.vector_store %arg7[%c0_16, %c0_17], %26 {strides = array<i32>} : memref<8x128xf32, #tpu.memory_space<vmem>>, vector<8x128xf32>,
    } else {
    }
    %c0 = arith.constant 0 : index
    %c0_2 = arith.constant 0 : index
    %5 = vector.load %arg5[%c0, %c0_2] : memref<16x128xf32, #tpu.memory_space<vmem>>, vector<16x128xf32>
    %cst = arith.constant 1.000000e+00 : f32
    %6 = vector.broadcast %cst : f32 to vector<16x128xf32>
    %7 = arith.subf %6, %5 : vector<16x128xf32>
    %cst_3 = arith.constant 5.000000e-01 : f32
    %8 = vector.broadcast %cst_3 : f32 to vector<16x128xf32>
    %9 = arith.mulf %7, %8 : vector<16x128xf32>
    %c0_4 = arith.constant 0 : index
    %c0_5 = arith.constant 0 : index
    %10 = vector.load %arg3[%c0_4, %c0_5] : memref<16x128xf32, #tpu.memory_space<vmem>>, vector<16x128xf32>
    %c0_6 = arith.constant 0 : index
    %c0_7 = arith.constant 0 : index
    %11 = vector.load %arg4[%c0_6, %c0_7] : memref<16x128xf32, #tpu.memory_space<vmem>>, vector<16x128xf32>
    %12 = arith.mulf %10, %9 : vector<16x128xf32>
    %13 = arith.mulf %11, %9 : vector<16x128xf32>
    %14 = arith.subf %12, %13 : vector<16x128xf32>
    %15 = arith.mulf %14, %14 : vector<16x128xf32>
    %c0_8 = arith.constant 0 : index
    %c0_9 = arith.constant 0 : index
    %16 = vector.load %arg7[%c0_8, %c0_9] : memref<8x128xf32, #tpu.memory_space<vmem>>, vector<8x128xf32>
    %17 = vector.shape_cast %15 : vector<16x128xf32> to vector<2x8x128xf32>
    %cst_10 = arith.constant dense<0.000000e+00> : vector<8x128xf32>
    %18 = vector.multi_reduction <add>, %17, %cst_10 [0] : vector<2x8x128xf32> to vector<8x128xf32>
    %19 = arith.addf %16, %18 : vector<8x128xf32>
    %c0_11 = arith.constant 0 : index
    %c0_12 = arith.constant 0 : index
    %20 = vector.load %arg7[%c0_11, %c0_12] : memref<8x128xf32, #tpu.memory_space<vmem>>, vector<8x128xf32>
    tpu.vector_store %arg7[%c0_11, %c0_12], %19 {strides = array<i32>} : memref<8x128xf32, #tpu.memory_space<vmem>>, vector<8x128xf32>,
    %c0_i32_13 = arith.constant 0 : i32
    %21 = arith.cmpi eq, %arg1, %c0_i32_13 : i32
    %c2_i32 = arith.constant 2 : i32
    %22 = arith.cmpi eq, %arg2, %c2_i32 : i32
    %23 = arith.andi %21, %22 : i1
    %24 = arith.extui %23 : i1 to i32
    %c0_i32_14 = arith.constant 0 : i32
    %25 = arith.cmpi ne, %24, %c0_i32_14 : i32
    scf.if %25 {
      %c0_15 = arith.constant 0 : index
      %c0_16 = arith.constant 0 : index
      %26 = vector.load %arg7[%c0_15, %c0_16] : memref<8x128xf32, #tpu.memory_space<vmem>>, vector<8x128xf32>
      %c0_17 = arith.constant 0 : index
      %c0_18 = arith.constant 0 : index
      %c0_19 = arith.constant 0 : index
      %27 = vector.load %arg6[%c0_17, %c0_18, %c0_19] : memref<1x8x128xf32, #tpu.memory_space<vmem>>, vector<1x8x128xf32>
      %28 = vector.shape_cast %27 : vector<1x8x128xf32> to vector<8x128xf32>
      %29 = vector.shape_cast %26 : vector<8x128xf32> to vector<1x8x128xf32>
      tpu.vector_store %arg6[%c0_17, %c0_18, %c0_19], %29 {strides = array<i32>} : memref<1x8x128xf32, #tpu.memory_space<vmem>>, vector<1x8x128xf32>,
    } else {
    }
    return
  }
  func.func @transform_0(%arg0: i32, %arg1: i32, %arg2: i32) -> (i32, i32) {
    %c3_i32 = arith.constant 3 : i32
    %0 = arith.muli %arg0, %c3_i32 : i32
    %1 = arith.addi %0, %arg2 : i32
    %c1_i32 = arith.constant 1 : i32
    %2 = arith.muli %1, %c1_i32 : i32
    %3 = arith.addi %2, %arg1 : i32
    %c0_i32 = arith.constant 0 : i32
    %c0_i32_0 = arith.constant 0 : i32
    return %3, %c0_i32 : i32, i32
  }
  func.func @transform_1(%arg0: i32, %arg1: i32, %arg2: i32) -> (i32, i32) {
    %c3_i32 = arith.constant 3 : i32
    %0 = arith.muli %arg0, %c3_i32 : i32
    %1 = arith.addi %0, %arg2 : i32
    %c1_i32 = arith.constant 1 : i32
    %2 = arith.muli %1, %c1_i32 : i32
    %3 = arith.addi %2, %arg1 : i32
    %c0_i32 = arith.constant 0 : i32
    %c0_i32_0 = arith.constant 0 : i32
    return %3, %c0_i32 : i32, i32
  }
  func.func @transform_2(%arg0: i32, %arg1: i32, %arg2: i32) -> (i32, i32) {
    %c1_i32 = arith.constant 1 : i32
    %0 = arith.muli %arg0, %c1_i32 : i32
    %1 = arith.addi %0, %arg1 : i32
    %c0_i32 = arith.constant 0 : i32
    %c0_i32_0 = arith.constant 0 : i32
    return %1, %c0_i32 : i32, i32
  }
  func.func @transform_3(%arg0: i32, %arg1: i32, %arg2: i32) -> (i32, i32, i32) {
    %c0_i32 = arith.constant 0 : i32
    %c0_i32_0 = arith.constant 0 : i32
    %c0_i32_1 = arith.constant 0 : i32
    return %arg0, %c0_i32, %c0_i32_0 : i32, i32, i32
  }
}

</mosaic_0001>

<llo_original>
// kernel: tpu_custom_call.1
$region0: #{tpu_custom_call.1}
  #allocation0 [shape = 'u32[]', space=smem, size = 0x4, offset = 0x4, fixed_abs, tag = 'smem constant byte address 0x4 - core index']
  #allocation1 [shape = 'u32[144,128]{1,0:T(1,128)}', space=vmem, size = 0x12000, scoped, tag = 'internal scratch']
  #allocation2 [shape = 'f32[8,128]{1,0:T(8,128)}', space=vmem, size = 0x1000, scoped, tag = 'scratch operand']
  %s0 = inlined_call_operand.hbm [shape: f32[96,128], index: 0, kind: input, shape index: {}]
  %s1 = inlined_call_operand.hbm [shape: f32[96,128], index: 1, kind: input, shape index: {}]
  %s2 = inlined_call_operand.hbm [shape: f32[32,128], index: 2, kind: input, shape index: {}]
  %s3 = inlined_call_operand.hbm [shape: f32[2,8,128], index: 3, kind: output, shape index: {}]
  %s4 = sld [smem:[#allocation0]]
  $region65: #{tpu_custom_call.1} parent=0
    _
  %s6 = ssub.s32 1, %s4
  %s7 = scalar_select 0, %s6, %s4
  $region1: #{tpu_custom_call.1} parent=0
    #allocation3 [shape = 'u8[16384]{0}', space=vmem, size = 0x4000, scoped, tag = 'input window, operand 0']
    #allocation4 [shape = 's32[2]{0}', space=sflag, size = 0x8, scoped, tag = 'scoped memory for tpu_custom_call.1']
    #allocation5 [shape = 's32[2]{0}', space=sflag, size = 0x8, scoped, tag = 'scoped memory for tpu_custom_call.1']
    #allocation6 [shape = 'u8[16384]{0}', space=vmem, size = 0x4000, scoped, tag = 'input window, operand 1']
    #allocation7 [shape = 's32[2]{0}', space=sflag, size = 0x8, scoped, tag = 'scoped memory for tpu_custom_call.1']
    #allocation8 [shape = 'u8[16384]{0}', space=vmem, size = 0x4000, scoped, tag = 'input window, operand 2']
    #allocation9 [shape = 'u8[8192]{0}', space=vmem, size = 0x2000, scoped, tag = 'output window, operand 0']
    %8 = vsyncpa [#allocation4], 0
    %s9 = scalar_lea.sflag [#allocation4], 1
    %10 = vsyncpa %s9, 0
    %11 = vsyncpa [#allocation7], 0
    %s12 = scalar_lea.sflag [#allocation7], 1
    %13 = vsyncpa %s12, 0
    %14 = vsyncpa [#allocation5], 0
    %s15 = scalar_lea.sflag [#allocation5], 1
    %16 = vsyncpa %s15, 0
    loop: start=0, step=1, limit=8
    $region2: #{tpu_custom_call.1} parent=1 // loop_pre_header
      _
    $region3: #{tpu_custom_call.1} parent=1 // loop_header
      %s18 = sphi 0, %s22
      %p19 = scmp.ge.s32.totalorder %s18, 8
      %s25 = sphi 0, %s44
      %s26 = sphi 0, %s40
      %s27 = sphi 0, %s36
      %s28 = sphi 0, %s25
      %s29 = sphi 0, %s26
      %s30 = sphi 0, %s27
      %s31 = sphi 0, %s28
      %s32 = sphi 0, %s29
      %s33 = sphi 0, %s30
      %s53 = sphi 0, %s55
      %s56 = sphi 0, %s53
      %s57 = sphi 0, %s56
      %s73 = sphi 0, %s57
      %s85 = sphi 0, %s87
      %s88 = sphi 0, %s85
      %s89 = sphi 0, %s88
      %s105 = sphi 0, %s89
      %s113 = sphi 0, %s115
      %s116 = sphi 0, %s113
      %s117 = sphi 0, %s116
      %s133 = sphi 0, %s117
      %s139 = sphi 0, %s141
      %s142 = sphi 0, %s139
      %s143 = sphi 0, %s142
      %s159 = sphi 0, %s143
    $region4: #{tpu_custom_call.1} parent=1 // loop_header_branch
      %21 = sbr.rel (%p19) target = $region8
    $region5: #{tpu_custom_call.1} parent=1 // loop_body
      %s23 = ssub.s32 %s18, 1
      %s24 = ssub.s32 %s18, 2
      %s34 = sadd.s32 1, %s27
      %p35 = scmp.ge.s32.totalorder %s34, 3
      %s36 = scalar_select %p35, 0, %s34
      %s37 = sadd.s32 1, %s26
      %s38 = scalar_select %p35, %s37, %s26
      %p39 = scmp.ge.s32.totalorder %s38, 1
      %s40 = scalar_select %p39, 0, %s38
      %s41 = sadd.s32 1, %s25
      %s42 = scalar_select %p39, %s41, %s25
      %p43 = scmp.ge.s32.totalorder %s42, 2
      %s44 = scalar_select %p43, 0, %s42
      %s45 = smul.u32 %s25, 3
      %s46 = sadd.s32 %s45, %s27
      %s47 = sadd.s32 %s46, %s26
      %s48 = smul.u32 %s44, 3
      %s49 = sadd.s32 %s48, %s36
      %s50 = sadd.s32 %s49, %s40
      %s51 = ssub.s32 %s47, %s50
      %p52 = scmp.eq.s32.totalorder %s51, 0
      %s54 = sadd.s32 %s53, 1
      %s55 = scalar_select %p52, %s53, %s54
      %p58 = pneg %p52
      %p59 = scmp.eq.s32.totalorder %s18, 5
      %p60 = por %p58, %p59
      %p61 = scmp.ne.s32.totalorder %s53, %s56
      %p62 = scmp.eq.s32.totalorder %s18, 0
      %p63 = por %p61, %p62
      %p64 = scmp.ne.s32.totalorder %s53, %s56
      %p65 = scmp.eq.s32.totalorder %s23, 5
      %p66 = por %p64, %p65
      %p67 = scmp.ne.s32.totalorder %s56, %s57
      %p68 = scmp.eq.s32.totalorder %s23, 0
      %p69 = por %p67, %p68
      %p70 = scmp.ne.s32.totalorder %s56, %s57
      %p71 = scmp.eq.s32.totalorder %s24, 5
      %p72 = por %p70, %p71
      %p74 = scmp.ne.s32.totalorder %s57, %s73
      %p75 = scmp.eq.s32.totalorder %s24, 0
      %p76 = por %p74, %p75
      %s77 = smul.u32 %s25, 3
      %s78 = sadd.s32 %s77, %s27
      %s79 = sadd.s32 %s78, %s26
      %s80 = smul.u32 %s44, 3
      %s81 = sadd.s32 %s80, %s36
      %s82 = sadd.s32 %s81, %s40
      %s83 = ssub.s32 %s79, %s82
      %p84 = scmp.eq.s32.totalorder %s83, 0
      %s86 = sadd.s32 %s85, 1
      %s87 = scalar_select %p84, %s85, %s86
      %p90 = pneg %p84
      %p91 = scmp.eq.s32.totalorder %s18, 5
      %p92 = por %p90, %p91
      %p93 = scmp.ne.s32.totalorder %s85, %s88
      %p94 = scmp.eq.s32.totalorder %s18, 0
      %p95 = por %p93, %p94
      %p96 = scmp.ne.s32.totalorder %s85, %s88
      %p97 = scmp.eq.s32.totalorder %s23, 5
      %p98 = por %p96, %p97
      %p99 = scmp.ne.s32.totalorder %s88, %s89
      %p100 = scmp.eq.s32.totalorder %s23, 0
      %p101 = por %p99, %p100
      %p102 = scmp.ne.s32.totalorder %s88, %s89
      %p103 = scmp.eq.s32.totalorder %s24, 5
      %p104 = por %p102, %p103
      %p106 = scmp.ne.s32.totalorder %s89, %s105
      %p107 = scmp.eq.s32.totalorder %s24, 0
      %p108 = por %p106, %p107
      %s109 = sadd.s32 %s25, %s26
      %s110 = sadd.s32 %s44, %s40
      %s111 = ssub.s32 %s109, %s110
      %p112 = scmp.eq.s32.totalorder %s111, 0
      %s114 = sadd.s32 %s113, 1
      %s115 = scalar_select %p112, %s113, %s114
      %p118 = pneg %p112
      %p119 = scmp.eq.s32.totalorder %s18, 5
      %p120 = por %p118, %p119
      %p121 = scmp.ne.s32.totalorder %s113, %s116
      %p122 = scmp.eq.s32.totalorder %s18, 0
      %p123 = por %p121, %p122
      %p124 = scmp.ne.s32.totalorder %s113, %s116
      %p125 = scmp.eq.s32.totalorder %s23, 5
      %p126 = por %p124, %p125
      %p127 = scmp.ne.s32.totalorder %s116, %s117
      %p128 = scmp.eq.s32.totalorder %s23, 0
      %p129 = por %p127, %p128
      %p130 = scmp.ne.s32.totalorder %s116, %s117
      %p131 = scmp.eq.s32.totalorder %s24, 5
      %p132 = por %p130, %p131
      %p134 = scmp.ne.s32.totalorder %s117, %s133
      %p135 = scmp.eq.s32.totalorder %s24, 0
      %p136 = por %p134, %p135
      %s137 = ssub.s32 %s25, %s44
      %p138 = scmp.eq.s32.totalorder %s137, 0
      %s140 = sadd.s32 %s139, 1
      %s141 = scalar_select %p138, %s139, %s140
      %p144 = pneg %p138
      %p145 = scmp.eq.s32.totalorder %s18, 5
      %p146 = por %p144, %p145
      %p147 = scmp.ne.s32.totalorder %s139, %s142
      %p148 = scmp.eq.s32.totalorder %s18, 0
      %p149 = por %p147, %p148
      %p150 = scmp.ne.s32.totalorder %s139, %s142
      %p151 = scmp.eq.s32.totalorder %s23, 5
      %p152 = por %p150, %p151
      %p153 = scmp.ne.s32.totalorder %s142, %s143
      %p154 = scmp.eq.s32.totalorder %s23, 0
      %p155 = por %p153, %p154
      %p156 = scmp.ne.s32.totalorder %s142, %s143
      %p157 = scmp.eq.s32.totalorder %s24, 5
      %p158 = por %p156, %p157
      %p160 = scmp.ne.s32.totalorder %s143, %s159
      %p161 = scmp.eq.s32.totalorder %s24, 0
      %p162 = por %p160, %p161
      %p163 = scmp.le.s32.totalorder 1, %s18
      %p164 = scmp.lt.s32.totalorder %s18, 7
      %p165 = pnand %p163, %p164
      %p166 = pneg %p165
      // Predicated region
      $region9: #{tpu_custom_call.1} parent=5 // pred_check
        _
      $region10: #{tpu_custom_call.1} parent=5 // pred_check_branch
        %168 = sbr.rel (%p165) target = $region12
      $region11: #{tpu_custom_call.1} parent=5 // pred_region
        %s169 = ssub.s32 %s18, 1
      $region12: #{tpu_custom_call.1} parent=5 // pred_fallthru
        _
      %p170 = scmp.lt.s32.totalorder %s18, 6
      // Predicated region
      $region13: #{tpu_custom_call.1} parent=5 // pred_check
        %p171 = pneg %p170
      $region14: #{tpu_custom_call.1} parent=5 // pred_check_branch
        %173 = sbr.rel (%p171) target = $region16
      $region15: #{tpu_custom_call.1} parent=5 // pred_region
        // Predicated region
        $region17: #{tpu_custom_call.1} parent=15 // pred_check
          %p174 = pneg %p63
        $region18: #{tpu_custom_call.1} parent=15 // pred_check_branch
          %176 = sbr.rel (%p174) target = $region20
        $region19: #{tpu_custom_call.1} parent=15 // pred_region
          %s177 = sand.u32 %s53, 1
          %s178 = scalar_lea.sflag [#allocation4], %s177
          %s179 = sand.u32 %s53, 1
          %s180 = smul.addr %s179, 16
          %s181 = scalar_lea.vmem [#allocation3], %s180
          %s182 = smul.u32 %s25, 3
          %s183 = sadd.s32 %s182, %s27
          %s184 = sadd.s32 %s183, %s26
          %s185 = smul.u32 2, %s184
          %s187 = ssub.s32 256, 256
          %188 = vsyncadd %s178, %s187
          %s189 = smul.addr %s185, 128
          %s190 = scalar_lea.hbm %s0, %s189
          %s191 = sshll.u32 %s181, 4
          %s192 = int_to_ptr.vmem [resolvable:$true] %s191
          %197 = dma.hbm_to_vmem [thread:$0]  %s190, 256, %s192, %s178, 128, 128, 8
        $region20: #{tpu_custom_call.1} parent=15 // pred_fallthru
          _
        // Predicated region
        $region21: #{tpu_custom_call.1} parent=15 // pred_check
          %p198 = pneg %p95
        $region22: #{tpu_custom_call.1} parent=15 // pred_check_branch
          %200 = sbr.rel (%p198) target = $region24
        $region23: #{tpu_custom_call.1} parent=15 // pred_region
          %s201 = sand.u32 %s18, 1
          %s202 = scalar_lea.sflag [#allocation7], %s201
          %s203 = sand.u32 %s85, 1
          %s204 = smul.addr %s203, 16
          %s205 = scalar_lea.vmem [#allocation6], %s204
          %s206 = smul.u32 %s25, 3
          %s207 = sadd.s32 %s206, %s27
          %s208 = sadd.s32 %s207, %s26
          %s209 = smul.u32 2, %s208
          %s211 = ssub.s32 256, 256
          %212 = vsyncadd %s202, %s211
          %s213 = smul.addr %s209, 128
          %s214 = scalar_lea.hbm %s1, %s213
          %s215 = sshll.u32 %s205, 4
          %s216 = int_to_ptr.vmem [resolvable:$true] %s215
          %221 = dma.hbm_to_vmem [thread:$0]  %s214, 256, %s216, %s202, 128, 128, 8
        $region24: #{tpu_custom_call.1} parent=15 // pred_fallthru
          _
        // Predicated region
        $region25: #{tpu_custom_call.1} parent=15 // pred_check
          %p222 = pneg %p123
        $region26: #{tpu_custom_call.1} parent=15 // pred_check_branch
          %224 = sbr.rel (%p222) target = $region28
        $region27: #{tpu_custom_call.1} parent=15 // pred_region
          %s225 = sand.u32 %s18, 1
          %s226 = scalar_lea.sflag [#allocation7], %s225
          %s227 = sand.u32 %s113, 1
          %s228 = smul.addr %s227, 16
          %s229 = scalar_lea.vmem [#allocation8], %s228
          %s230 = sadd.s32 %s25, %s26
          %s231 = smul.u32 2, %s230
          %s233 = ssub.s32 256, 256
          %234 = vsyncadd %s226, %s233
          %s235 = smul.addr %s231, 128
          %s236 = scalar_lea.hbm %s2, %s235
          %s237 = sshll.u32 %s229, 4
          %s238 = int_to_ptr.vmem [resolvable:$true] %s237
          %243 = dma.hbm_to_vmem [thread:$0]  %s236, 256, %s238, %s226, 128, 128, 8
        $region28: #{tpu_custom_call.1} parent=15 // pred_fallthru
          _
      $region16: #{tpu_custom_call.1} parent=5 // pred_fallthru
        _
      %p244 = scmp.le.s32.totalorder 1, %s18
      %p245 = scmp.lt.s32.totalorder %s18, 7
      %p246 = pnand %p244, %p245
      %p247 = pneg %p246
      // Predicated region
      $region29: #{tpu_custom_call.1} parent=5 // pred_check
        _
      $region30: #{tpu_custom_call.1} parent=5 // pred_check_branch
        %249 = sbr.rel (%p246) target = $region32
      $region31: #{tpu_custom_call.1} parent=5 // pred_region
        %s250 = ssub.s32 %s18, 1
        %s251 = sand.u32 %s56, 1
        %s252 = scalar_lea.sflag [#allocation4], %s251
        %s253 = sand.u32 %s56, 1
        %s254 = smul.addr %s253, 16
        %s255 = scalar_lea.vmem [#allocation3], %s254
        // Predicated region
        $region33: #{tpu_custom_call.1} parent=31 // pred_check
          %p256 = pneg %p69
        $region34: #{tpu_custom_call.1} parent=31 // pred_check_branch
          %258 = sbr.rel (%p256) target = $region36
        $region35: #{tpu_custom_call.1} parent=31 // pred_region
          %259 = dma.done %s252, 256
        $region36: #{tpu_custom_call.1} parent=31 // pred_fallthru
          _
        %s260 = sand.u32 %s23, 1
        %s261 = scalar_lea.sflag [#allocation7], %s260
        %s262 = sand.u32 %s88, 1
        %s263 = smul.addr %s262, 16
        %s264 = scalar_lea.vmem [#allocation6], %s263
        // Predicated region
        $region37: #{tpu_custom_call.1} parent=31 // pred_check
          %p265 = pneg %p101
        $region38: #{tpu_custom_call.1} parent=31 // pred_check_branch
          %267 = sbr.rel (%p265) target = $region40
        $region39: #{tpu_custom_call.1} parent=31 // pred_region
          %268 = dma.done %s261, 256
        $region40: #{tpu_custom_call.1} parent=31 // pred_fallthru
          _
        %s269 = sand.u32 %s23, 1
        %s270 = scalar_lea.sflag [#allocation7], %s269
        %s271 = sand.u32 %s116, 1
        %s272 = smul.addr %s271, 16
        %s273 = scalar_lea.vmem [#allocation8], %s272
        // Predicated region
        $region41: #{tpu_custom_call.1} parent=31 // pred_check
          %p274 = pneg %p129
        $region42: #{tpu_custom_call.1} parent=31 // pred_check_branch
          %276 = sbr.rel (%p274) target = $region44
        $region43: #{tpu_custom_call.1} parent=31 // pred_region
          %277 = dma.done %s270, 256
        $region44: #{tpu_custom_call.1} parent=31 // pred_fallthru
          _
        %s278 = sand.u32 %s56, 1
        %s279 = scalar_lea.sflag [#allocation4], %s278
        %s280 = sand.u32 %s56, 1
        %s281 = smul.addr %s280, 16
        %s282 = scalar_lea.vmem [#allocation3], %s281
        %p283 = pneg %p69
        %p284 = pneg %p66
        %s285 = sand.u32 %s23, 1
        %s286 = scalar_lea.sflag [#allocation7], %s285
        %s287 = sand.u32 %s88, 1
        %s288 = smul.addr %s287, 16
        %s289 = scalar_lea.vmem [#allocation6], %s288
        %p290 = pneg %p101
        %p291 = pneg %p98
        %s292 = sand.u32 %s23, 1
        %s293 = scalar_lea.sflag [#allocation7], %s292
        %s294 = sand.u32 %s116, 1
        %s295 = smul.addr %s294, 16
        %s296 = scalar_lea.vmem [#allocation8], %s295
        %p297 = pneg %p129
        %p298 = pneg %p126
        %p299 = pneg %p155
        %p300 = pneg %p152
        %s301 = sand.u32 %s142, 1
        %s302 = scalar_lea.sflag [#allocation5], %s301
        %s303 = sand.u32 %s142, 1
        %s304 = smul.addr %s303, 8
        %s305 = scalar_lea.vmem [#allocation9], %s304
        %s306 = smul.u32 %s28, 3
        %s307 = sadd.s32 %s306, %s30
        %s308 = sadd.s32 %s307, %s29
        %s309 = smul.u32 2, %s308
        %s310 = smul.u32 %s28, 3
        %s311 = sadd.s32 %s310, %s30
        %s312 = sadd.s32 %s311, %s29
        %s313 = smul.u32 2, %s312
        %s314 = sadd.s32 %s28, %s29
        %s315 = smul.u32 2, %s314
        %p316 = scmp.eq.s32.totalorder %s29, 0
        %p317 = scmp.eq.s32.totalorder %s30, 0
        %p318 = pnand %p316, %p317
        %p319 = pneg %p318
        // Predicated region
        $region45: #{tpu_custom_call.1} parent=31 // pred_check
          _
        $region46: #{tpu_custom_call.1} parent=31 // pred_check_branch
          %321 = sbr.rel (%p318) target = $region48
        $region47: #{tpu_custom_call.1} parent=31 // pred_region
          %322 = vst [vmem:[#allocation2] sm:$0xff] 0.0
        $region48: #{tpu_custom_call.1} parent=31 // pred_fallthru
          _
        %v323 = vld [vmem:[%s273] sm:$0xff]
        %v324 = vld [vmem:[%s273 + $0x8] sm:$0xff]
        %v325 = vsub.f32 1.0, %v323
        %v326 = vsub.f32 1.0, %v324
        %v327 = vmul.f32 %v325, 0.5
        %v328 = vmul.f32 %v326, 0.5
        %v329 = vld [vmem:[%s255] sm:$0xff]
        %v330 = vld [vmem:[%s255 + $0x8] sm:$0xff]
        %v331 = vld [vmem:[%s264] sm:$0xff]
        %v332 = vld [vmem:[%s264 + $0x8] sm:$0xff]
        %v333 = vmul.f32 %v329, %v327
        %v334 = vmul.f32 %v330, %v328
        %v335 = vmul.f32 %v331, %v327
        %v336 = vmul.f32 %v332, %v328
        %v337 = vsub.f32 %v333, %v335
        %v338 = vsub.f32 %v334, %v336
        %v339 = vmul.f32 %v337, %v337
        %v340 = vmul.f32 %v338, %v338
        %v341 = vld [vmem:[#allocation2] sm:$0xff]
        %v342 = vadd.f32 %v339, %v340
        %v343 = vadd.f32 %v341, %v342
        %344 = vst [vmem:[#allocation2] sm:$0xff] %v343
        %p345 = scmp.eq.s32.totalorder %s30, 2
        %p346 = pnand %p316, %p345
        %p347 = pneg %p346
        // Predicated region
        $region49: #{tpu_custom_call.1} parent=31 // pred_check
          _
        $region50: #{tpu_custom_call.1} parent=31 // pred_check_branch
          %349 = sbr.rel (%p346) target = $region52
        $region51: #{tpu_custom_call.1} parent=31 // pred_region
          %v350 = vld [vmem:[#allocation2] sm:$0xff]
          %351 = vst [vmem:[%s305] sm:$0xff] %v350
        $region52: #{tpu_custom_call.1} parent=31 // pred_fallthru
          _
        %s352 = sand.u32 %s142, 1
        %s353 = scalar_lea.sflag [#allocation5], %s352
        %s354 = sand.u32 %s142, 1
        %s355 = smul.addr %s354, 8
        %s356 = scalar_lea.vmem [#allocation9], %s355
        // Predicated region
        $region53: #{tpu_custom_call.1} parent=31 // pred_check
          %p357 = pneg %p152
        $region54: #{tpu_custom_call.1} parent=31 // pred_check_branch
          %359 = sbr.rel (%p357) target = $region56
        $region55: #{tpu_custom_call.1} parent=31 // pred_region
          %s361 = ssub.s32 128, 128
          %362 = vsyncadd %s353, %s361
          %s363 = smul.addr %s28, 128
          %s364 = scalar_lea.hbm %s3, %s363
          %s366 = sshll.u32 %s356, 4
          %s367 = int_to_ptr.vmem [resolvable:$true] %s366
          %369 = dma.vmem_to_hbm [thread:$0]  %s367, 128, %s364, %s353
        $region56: #{tpu_custom_call.1} parent=31 // pred_fallthru
          _
      $region32: #{tpu_custom_call.1} parent=5 // pred_fallthru
        _
      %p370 = scmp.le.s32.totalorder 2, %s18
      // Predicated region
      $region57: #{tpu_custom_call.1} parent=5 // pred_check
        %p371 = pneg %p370
      $region58: #{tpu_custom_call.1} parent=5 // pred_check_branch
        %373 = sbr.rel (%p371) target = $region60
      $region59: #{tpu_custom_call.1} parent=5 // pred_region
        %s374 = ssub.s32 %s18, 2
        // Predicated region
        $region61: #{tpu_custom_call.1} parent=59 // pred_check
          %p375 = pneg %p158
        $region62: #{tpu_custom_call.1} parent=59 // pred_check_branch
          %377 = sbr.rel (%p375) target = $region64
        $region63: #{tpu_custom_call.1} parent=59 // pred_region
          %s378 = sand.u32 %s143, 1
          %s379 = scalar_lea.sflag [#allocation5], %s378
          %s380 = sand.u32 %s143, 1
          %s381 = smul.addr %s380, 8
          %s382 = scalar_lea.vmem [#allocation9], %s381
          %383 = dma.done %s379, 128
        $region64: #{tpu_custom_call.1} parent=59 // pred_fallthru
          _
      $region60: #{tpu_custom_call.1} parent=5 // pred_fallthru
        _
    $region6: #{tpu_custom_call.1} parent=1 // loop_footer
      %s22 = sadd.s32 1, %s18
    $region7: #{tpu_custom_call.1} parent=1 // loop_footer_branch
      %17 = sbr.rel target = $region3
    $region8: #{tpu_custom_call.1} parent=1 // loop_exit
      _
    %384 = vsyncpa [#allocation4], 1
    %s385 = scalar_lea.sflag [#allocation4], 1
    %386 = vsyncpa %s385, 1
    %387 = vsyncpa [#allocation7], 1
    %s388 = scalar_lea.sflag [#allocation7], 1
    %389 = vsyncpa %s388, 1
    %390 = vsyncpa [#allocation5], 1
    %s391 = scalar_lea.sflag [#allocation5], 1
    %392 = vsyncpa %s391, 1

</llo_original>
